<compile_context>
chip_gen: v7x
topology: tpu7x:2x2x1
jax: 0.10.0
libtpu: 0.0.40
codegen_flags: <defaults>
</compile_context>

<pallas_src>
import jax
import jax.numpy as jnp
from jax.experimental import pallas as pl
from jax.experimental.pallas import tpu as pltpu


def _round_up(a, m):
    return (a + m - 1) // m * m


def _linear_kernel(x_ref, w_ref, b_ref, o_ref):
    # One row-tile of tokens against one (C, tn) weight column tile; f32 accumulation.
    acc = jnp.dot(x_ref[...], w_ref[...], preferred_element_type=jnp.float32)
    o_ref[...] = (acc + b_ref[...]).astype(o_ref.dtype)


def _pixel_conv_matmul(x2d, weight_oc, bias, *, tm=512, out_dtype=None):
    """x2d: (M, C); weight_oc: (N, C) PyTorch 1x1-conv layout; bias: (N,) -> (M, N)."""
    M, C = x2d.shape
    N = weight_oc.shape[0]
    compute_dtype = x2d.dtype
    out_dtype = compute_dtype if out_dtype is None else out_dtype

    w2d = jnp.transpose(weight_oc).astype(compute_dtype)        # (C, N): kernel does x @ W
    b2d = bias.reshape(1, N).astype(jnp.float32)                # f32 bias for f32 accum

    x_item = jnp.dtype(compute_dtype).itemsize
    w_item = x_item
    o_item = jnp.dtype(out_dtype).itemsize

    # ---- VMEM budget (trace-time query; conservative v7x fallback) ----
    vmem_cap = 64 * 1024 * 1024
    try:
        vmem_cap = int(pltpu.get_tpu_info().vmem_capacity_bytes)
    except Exception:
        pass
    budget = (vmem_cap * 3) // 4

    # ---- N tiling: only when the resident (double-buffered) weight would blow VMEM ----
    if N <= 256 or 2 * C * N * w_item <= budget // 4:
        tn, gn = N, 1                                           # full-extent N block
    else:
        tn = 256                                                # 256-wide: full v6e/v7x MXU pass
        while tn * 2 < N and 2 * C * (tn * 2) * w_item <= budget // 4:
            tn *= 2
        gn = pl.cdiv(N, tn)

    # ---- row tile: big for HBM efficiency, but >= ~8 grid steps when M allows ----
    row_align = 16 if x_item < 4 else 8                         # bf16 sublane packing
    tm_eff = min(int(tm), _round_up(M, row_align))
    if M > 2 * 256:
        tm_eff = min(tm_eff, max(256, _round_up(pl.cdiv(M, 8), row_align)))
    tm_eff = max(row_align, tm_eff - tm_eff % row_align)

    def vmem_need(t):
        return (2 * t * C * x_item          # x row tile, double buffered
                + 2 * t * tn * o_item       # out tile, double buffered
                + 2 * C * tn * w_item       # weight column tile, double buffered
                + 4 * tn * 4)               # bias

    while tm_eff > row_align and vmem_need(tm_eff) > budget:
        tm_eff = max(row_align, (tm_eff // 2) - (tm_eff // 2) % row_align)

    gm = pl.cdiv(M, tm_eff)
    vmem_limit = int(min(budget, max(vmem_need(tm_eff) + (8 << 20), 16 << 20)))

    cost = pl.CostEstimate(
        flops=2 * M * C * N,
        transcendentals=0,
        bytes_accessed=M * C * x_item + C * N * w_item + N * 4 + M * N * o_item,
    )

    return pl.pallas_call(
        _linear_kernel,
        out_shape=jax.ShapeDtypeStruct((M, N), out_dtype),
        grid_spec=pltpu.PrefetchScalarGridSpec(
            num_scalar_prefetch=0,
            grid=(gm, gn),
            in_specs=[
                pl.BlockSpec((tm_eff, C), lambda i, j: (i, 0)),   # x row tile (full C)
                pl.BlockSpec((C, tn), lambda i, j: (0, j)),       # weight column tile
                pl.BlockSpec((1, tn), lambda i, j: (0, j)),       # bias
            ],
            out_specs=pl.BlockSpec((tm_eff, tn), lambda i, j: (i, j)),
        ),
        compiler_params=pltpu.CompilerParams(
            dimension_semantics=("parallel", "parallel"),
            vmem_limit_bytes=vmem_limit,
        ),
        cost_estimate=cost,
    )(x2d, w2d, b2d)


def decode_to_image(x, conv_weight, conv_bias, *, patch_size, out_channels,
                    num_patches_h=None, num_patches_w=None, tm=512, out_dtype=None):
    """Pallas TPU implementation of decodeToImage.forward.

    x:           (B, L, d_model) token-major activations, L = H*W
    conv_weight: (out_channels*p*p, d_model)  1x1-conv weight (PyTorch layout, 1x1 squeezed)
    conv_bias:   (out_channels*p*p,)
    returns:     (B, out_channels, H*p, W*p)
    """
    B, L, C = x.shape
    p = patch_size
    if num_patches_h is None:
        num_patches_h = int(round(L ** 0.5))
    if num_patches_w is None:
        num_patches_w = L // num_patches_h
    H, W = num_patches_h, num_patches_w
    assert H * W == L, "L must equal num_patches_h * num_patches_w"
    N = out_channels * p * p
    assert conv_weight.shape == (N, C)

    y2d = _pixel_conv_matmul(x.reshape(B * L, C), conv_weight, conv_bias,
                             tm=tm, out_dtype=out_dtype)          # (B*L, N), channels (c,i,j)

    # PixelShuffle: channel o = c*p*p + i*p + j  ->  out[b, c, h*p+i, w*p+j]
    # TODO(synk): depth-to-space left in XLA (one transpose pass over (M, N)); see header
    # for why it is not fused into the out BlockSpec.
    y = y2d.reshape(B, H, W, out_channels, p, p)      # b h w c i j
    y = jnp.transpose(y, (0, 3, 1, 4, 2, 5))          # b c h i w j
    return y.reshape(B, out_channels, H * p, W * p)


def _reference(x, conv_weight, conv_bias, *, patch_size, out_channels, H, W):
    """Literal port of the PyTorch forward (transpose/view, 1x1 conv, PixelShuffle)."""
    B, L, C = x.shape
    p = patch_size
    x_img = jnp.transpose(x, (0, 2, 1)).reshape(B, C, H, W)
    y = jnp.einsum("oc,bchw->bohw", conv_weight, x_img,
                   precision=jax.lax.Precision.HIGHEST)
    y = y + conv_bias[None, :, None, None]
    y = y.reshape(B, out_channels, p, p, H, W)
    y = jnp.transpose(y, (0, 1, 4, 2, 5, 3))          # b c h i w j
    return y.reshape(B, out_channels, H * p, W * p)


if __name__ == "__main__":
    key = jax.random.PRNGKey(0)
    k_x, k_w, k_b = jax.random.split(key, 3)

    B = 2
    d_model = 32
    H = W = 4                     # num_patches_h = num_patches_w = 4 -> L = 16
    p = 2                         # patch_size
    out_channels = 3
    L = H * W
    N = out_channels * p * p

    x = jax.random.normal(k_x, (B, L, d_model), dtype=jnp.float32)
    conv_weight = jax.random.normal(k_w, (N, d_model), dtype=jnp.float32) / (d_model ** 0.5)
    conv_bias = jax.random.normal(k_b, (N,), dtype=jnp.float32) * 0.01

    ref = _reference(x, conv_weight, conv_bias, patch_size=p,
                     out_channels=out_channels, H=H, W=W)

    # 1) Default f32 path (single row tile).
    out = decode_to_image(x, conv_weight, conv_bias, patch_size=p,
                          out_channels=out_channels, num_patches_h=H, num_patches_w=W)
    jax.block_until_ready(out)
    assert out.shape == (B, out_channels, H * p, W * p), out.shape
    assert jnp.allclose(out, ref, atol=1e-4, rtol=1e-4), float(jnp.max(jnp.abs(out - ref)))

    # 2) Ragged row-grid path (tm does not divide M -> masked last tile).
    out_ragged = decode_to_image(x, conv_weight, conv_bias, patch_size=p,
                                 out_channels=out_channels, num_patches_h=H,
                                 num_patches_w=W, tm=24)
    jax.block_until_ready(out_ragged)
    assert jnp.allclose(out_ragged, ref, atol=1e-4, rtol=1e-4), \
        float(jnp.max(jnp.abs(out_ragged - ref)))

    # 3) bf16 end-to-end path (caller supplies bf16 activations; no in-wrapper cast).
    out_bf16 = decode_to_image(x.astype(jnp.bfloat16), conv_weight, conv_bias,
                               patch_size=p, out_channels=out_channels,
                               num_patches_h=H, num_patches_w=W)
    jax.block_until_ready(out_bf16)
    assert out_bf16.dtype == jnp.bfloat16
    assert jnp.allclose(out_bf16.astype(jnp.float32), ref, atol=0.25, rtol=0.05), \
        float(jnp.max(jnp.abs(out_bf16.astype(jnp.float32) - ref)))

    print("KERNEL_OK")
</pallas_src>

<mosaic_0001>
module attributes {stable_mosaic.version = 11 : i64} {
  func.func @_linear_kernel(%arg0: i32, %arg1: i32, %arg2: memref<32x32xf32, #tpu.memory_space<vmem>>, %arg3: memref<32x12xf32, #tpu.memory_space<vmem>>, %arg4: memref<1x12xf32, #tpu.memory_space<vmem>>, %arg5: memref<32x12xf32, #tpu.memory_space<vmem>>) attributes {dimension_semantics = [#tpu.dimension_semantics<parallel>, #tpu.dimension_semantics<parallel>], iteration_bounds = array<i64: 1, 1>, scalar_prefetch = 0 : i64, scratch_operands = 0 : i64, tpu.core_type = #tpu.core_type<tc>, window_params = [{transform_indices = @transform_0, window_bounds = array<i64: 32, 32>}, {transform_indices = @transform_1, window_bounds = array<i64: 32, 12>}, {transform_indices = @transform_2, window_bounds = array<i64: 1, 12>}, {transform_indices = @transform_3, window_bounds = array<i64: 32, 12>}]} {
    %c0 = arith.constant 0 : index
    %c0_0 = arith.constant 0 : index
    %0 = vector.load %arg2[%c0, %c0_0] : memref<32x32xf32, #tpu.memory_space<vmem>>, vector<32x32xf32>
    %c0_1 = arith.constant 0 : index
    %c0_2 = arith.constant 0 : index
    %1 = vector.load %arg3[%c0_1, %c0_2] : memref<32x12xf32, #tpu.memory_space<vmem>>, vector<32x12xf32>
    %cst = arith.constant dense<0.000000e+00> : vector<32x12xf32>
    %2 = tpu.matmul %0, %1, %cst {dimension_numbers = #tpu.dot_dimension_numbers<[1], [0], [0], [1], [0, 0, 1, 1], [], []>} : vector<32x32xf32>, vector<32x12xf32>, vector<32x12xf32> -> vector<32x12xf32>
    %c0_3 = arith.constant 0 : index
    %c0_4 = arith.constant 0 : index
    %3 = vector.load %arg4[%c0_3, %c0_4] : memref<1x12xf32, #tpu.memory_space<vmem>>, vector<1x12xf32>
    %4 = vector.broadcast %3 : vector<1x12xf32> to vector<32x12xf32>
    %5 = arith.addf %2, %4 : vector<32x12xf32>
    %c0_5 = arith.constant 0 : index
    %c0_6 = arith.constant 0 : index
    %6 = vector.load %arg5[%c0_5, %c0_6] : memref<32x12xf32, #tpu.memory_space<vmem>>, vector<32x12xf32>
    tpu.vector_store %arg5[%c0_5, %c0_6], %5 {strides = array<i32>} : memref<32x12xf32, #tpu.memory_space<vmem>>, vector<32x12xf32>,
    return
  }
  func.func @transform_0(%arg0: i32, %arg1: i32) -> (i32, i32) {
    %c0_i32 = arith.constant 0 : i32
    %c0_i32_0 = arith.constant 0 : i32
    return %arg0, %c0_i32 : i32, i32
  }
  func.func @transform_1(%arg0: i32, %arg1: i32) -> (i32, i32) {
    %c0_i32 = arith.constant 0 : i32
    %c0_i32_0 = arith.constant 0 : i32
    return %c0_i32, %arg1 : i32, i32
  }
  func.func @transform_2(%arg0: i32, %arg1: i32) -> (i32, i32) {
    %c0_i32 = arith.constant 0 : i32
    %c0_i32_0 = arith.constant 0 : i32
    return %c0_i32, %arg1 : i32, i32
  }
  func.func @transform_3(%arg0: i32, %arg1: i32) -> (i32, i32) {
    %c0_i32 = arith.constant 0 : i32
    return %arg0, %arg1 : i32, i32
  }
}

</mosaic_0001>

<llo_original>
// kernel: tpu_custom_call.1
$region0: #{tpu_custom_call.1}
  #allocation0 [shape = 'u32[]', space=smem, size = 0x4, offset = 0x4, fixed_abs, tag = 'smem constant byte address 0x4 - core index']
  #allocation1 [shape = 'u32[144,128]{1,0:T(1,128)}', space=vmem, size = 0x12000, scoped, tag = 'internal scratch']
  %s0 = inlined_call_operand.vmem [shape: f32[32,32], index: 0, kind: input, shape index: {}]
  %s1 = inlined_call_operand.vmem [shape: f32[32,12], index: 1, kind: input, shape index: {}]
  %s2 = inlined_call_operand.vmem [shape: f32[1,12], index: 2, kind: input, shape index: {}]
  %s3 = inlined_call_operand.vmem [shape: f32[32,12], index: 3, kind: output, shape index: {}]
  %s4 = sld [smem:[#allocation0]]
  $region22: #{tpu_custom_call.1} parent=0
    _
  %s6 = ssub.s32 1, %s4
  %s7 = scalar_select 0, %s6, %s4
  // Predicated region
  $region2: #{tpu_custom_call.1} parent=0 // pred_check
    _
  $region3: #{tpu_custom_call.1} parent=0 // pred_check_branch
    %9 = sbr.rel (0) target = $region5
  $region4: #{tpu_custom_call.1} parent=0 // pred_region
    _
  $region5: #{tpu_custom_call.1} parent=0 // pred_fallthru
    _
  // Predicated region
  $region6: #{tpu_custom_call.1} parent=0 // pred_check
    _
  $region7: #{tpu_custom_call.1} parent=0 // pred_check_branch
    %11 = sbr.rel (0) target = $region9
  $region8: #{tpu_custom_call.1} parent=0 // pred_region
    _
  $region9: #{tpu_custom_call.1} parent=0 // pred_fallthru
    _
  // Predicated region
  $region10: #{tpu_custom_call.1} parent=0 // pred_check
    _
  $region11: #{tpu_custom_call.1} parent=0 // pred_check_branch
    %13 = sbr.rel (0) target = $region13
  $region12: #{tpu_custom_call.1} parent=0 // pred_region
    _
  $region13: #{tpu_custom_call.1} parent=0 // pred_fallthru
    _
  %v14 = vld [vmem:[%s0] sm:$0xff]
  %v15 = vld [vmem:[%s0 + $0x8] sm:$0xff]
  %v16 = vld [vmem:[%s0 + $0x10] sm:$0xff]
  %v17 = vld [vmem:[%s0 + $0x18] sm:$0xff]
  %v18 = vld [vmem:[%s1] sm:$0xff]
  %v19 = vld [vmem:[%s1 + $0x8] sm:$0xff]
  %v20 = vld [vmem:[%s1 + $0x10] sm:$0xff]
  %v21 = vld [vmem:[%s1 + $0x18] sm:$0xff]
  %v22 = vld [vmem:[%s2] sm:$0x1]
  %v24 = vlaneseq
  %v25 = vshrl.u32 %v24, 7
  %v26 = vsub.s32 0, %v25
  %v27 = vrot.slane %v22, %v26
  %vm29 = vcmask 261120
  %v31 = vsel %vm29, %v14, 0
  %v34 = vsel %vm29, %v15, 0
  %v37 = vsel %vm29, %v16, 0
  %v40 = vsel %vm29, %v17, 0
  %42 = vmatprep.subr.mxu0 0.0
  %43 = vmatpush1.msra.mxu0 %v18
  %44 = vmatprep.subr.mxu0 0.0
  %45 = vmatpush1.msra.mxu0 %v19
  %46 = vmatprep.subr.mxu0 0.0
  %47 = vmatpush1.msra.mxu0 %v20
  %48 = vmatprep.subr.mxu0 0.0
  %49 = vmatpush1.msra.mxu0 %v21
  %50 = vmatprep.subr.mxu0 0.0
  %51 = vmatpush1.msra.mxu0 0.0
  %52 = vmatprep.subr.mxu0 0.0
  %53 = vmatpush1.msra.mxu0 0.0
  %54 = vmatprep.subr.mxu0 0.0
  %55 = vmatpush1.msra.mxu0 0.0
  %56 = vmatprep.subr.mxu0 0.0
  %57 = vmatpush1.msra.mxu0 0.0
  %58 = vmatprep.subr.mxu0 0.0
  %59 = vmatpush1.msra.mxu0 0.0
  %60 = vmatprep.subr.mxu0 0.0
  %61 = vmatpush1.msra.mxu0 0.0
  %62 = vmatprep.subr.mxu0 0.0
  %63 = vmatpush1.msra.mxu0 0.0
  %64 = vmatprep.subr.mxu0 0.0
  %65 = vmatpush1.msra.mxu0 0.0
  %66 = vmatprep.subr.mxu0 0.0
  %67 = vmatpush1.msra.mxu0 0.0
  %68 = vmatprep.subr.mxu0 0.0
  %69 = vmatpush1.msra.mxu0 0.0
  %70 = vmatprep.subr.mxu0 0.0
  %71 = vmatpush1.msra.mxu0 0.0
  %72 = vmatprep.subr.mxu0 0.0
  %73 = vmatpush1.msra.mxu0 0.0
  %74 = vmatprep.subr.mxu0 0.0
  %75 = vmatpush1.msra.mxu0 0.0
  %76 = vmatprep.subr.mxu0 0.0
  %77 = vmatpush1.msra.mxu0 0.0
  %78 = vmatprep.subr.mxu0 0.0
  %79 = vmatpush1.msra.mxu0 0.0
  %80 = vmatprep.subr.mxu0 0.0
  %81 = vmatpush1.msra.mxu0 0.0
  %82 = vmatprep.subr.mxu0 0.0
  %83 = vmatpush1.msra.mxu0 0.0
  %84 = vmatprep.subr.mxu0 0.0
  %85 = vmatpush1.msra.mxu0 0.0
  %86 = vmatprep.subr.mxu0 0.0
  %87 = vmatpush1.msra.mxu0 0.0
  %88 = vmatprep.subr.mxu0 0.0
  %89 = vmatpush1.msra.mxu0 0.0
  %90 = vmatprep.subr.mxu0 0.0
  %91 = vmatpush1.msra.mxu0 0.0
  %92 = vmatprep.subr.mxu0 0.0
  %93 = vmatpush1.msra.mxu0 0.0
  %94 = vmatprep.subr.mxu0 0.0
  %95 = vmatpush1.msra.mxu0 0.0
  %96 = vmatprep.subr.mxu0 0.0
  %97 = vmatpush1.msra.mxu0 0.0
  %98 = vmatprep.subr.mxu0 0.0
  %99 = vmatpush1.msra.mxu0 0.0
  %100 = vmatprep.subr.mxu0 0.0
  %101 = vmatpush1.msra.mxu0 0.0
  %102 = vmatprep.subr.mxu0 0.0
  %103 = vmatpush1.msra.mxu0 0.0
  %104 = vmatprep.subr.mxu0 0.0
  %105 = vmatpush1.msra.mxu0 0.0
  %106 = vmatprep.mubr.f32.mxu0 0.0
  %107 = vmatmul.mubr.f32.gmra.mrb[0].mxu0 %v31
  %v108 = vpop.f32.mrb[0].mxu0
  %v109 = vadd.f32 %v27, %v108
  %v110 = vpop.f32.mrb[0].mxu0
  %111 = vmatprep.mubr.f32.mxu0 0.0
  %112 = vmatmul.mubr.f32.gmra.mrb[0].mxu0 %v34
  %v113 = vpop.f32.mrb[0].mxu0
  %v114 = vadd.f32 %v27, %v113
  %v115 = vpop.f32.mrb[0].mxu0
  %116 = vmatprep.mubr.f32.mxu0 0.0
  %117 = vmatmul.mubr.f32.gmra.mrb[0].mxu0 %v37
  %v118 = vpop.f32.mrb[0].mxu0
  %v119 = vadd.f32 %v27, %v118
  %v120 = vpop.f32.mrb[0].mxu0
  %121 = vmatprep.mubr.f32.mxu0 0.0
  %122 = vmatmul.mubr.f32.gmra.mrb[0].mxu0 %v40
  %v123 = vpop.f32.mrb[0].mxu0
  %v124 = vadd.f32 %v27, %v123
  %v125 = vpop.f32.mrb[0].mxu0
  %126 = vdwg.mxu0
  %vm127 = vcmask 97280
  %128 = vst.msk [vmem:[%s3] sm:$0xff] %vm127, %v109
  %129 = vst.msk [vmem:[%s3 + $0x8] sm:$0xff] %vm127, %v114
  %130 = vst.msk [vmem:[%s3 + $0x10] sm:$0xff] %vm127, %v119
  %131 = vst.msk [vmem:[%s3 + $0x18] sm:$0xff] %vm127, %v124
  // Predicated region
  $region14: #{tpu_custom_call.1} parent=0 // pred_check
    _
  $region15: #{tpu_custom_call.1} parent=0 // pred_check_branch
    %133 = sbr.rel (0) target = $region17
  $region16: #{tpu_custom_call.1} parent=0 // pred_region
    _
  $region17: #{tpu_custom_call.1} parent=0 // pred_fallthru
    _
  // Predicated region
  $region18: #{tpu_custom_call.1} parent=0 // pred_check
    _
  $region19: #{tpu_custom_call.1} parent=0 // pred_check_branch
    %135 = sbr.rel (0) target = $region21
  $region20: #{tpu_custom_call.1} parent=0 // pred_region
    _
  $region21: #{tpu_custom_call.1} parent=0 // pred_fallthru
    _

</llo_original>
